<compile_context>
chip_gen: v7x
topology: tpu7x:2x2x1
jax: 0.10.0
libtpu: 0.0.40
codegen_flags: <defaults>
</compile_context>

<pallas_src>
import functools

import jax
import jax.numpy as jnp
from jax import lax
from jax.experimental import pallas as pl
from jax.experimental.pallas import tpu as pltpu

_MIB = 1024 * 1024
_MAX_SLAB_WIDTH = 8192


# ----------------------------- tuning -------------------------------------- #
@functools.lru_cache(maxsize=None)
def _tuning():
    """(per-buffer block bytes, vmem_limit_bytes) for the current TPU generation."""
    kind = ""
    try:
        kind = jax.devices()[0].device_kind.lower()
    except Exception:
        pass
    vmem_cap = None
    try:
        vmem_cap = getattr(pltpu.get_tpu_info(), "vmem_capacity_bytes", None)
    except Exception:
        pass

    if "v5 lite" in kind or "v5e" in kind or "v5lite" in kind:
        block_bytes, vmem_limit = 4 * _MIB, 32 * _MIB       # v5e: ~0.8 TB/s HBM
    elif "v7" in kind or (vmem_cap is not None and vmem_cap <= 64 * _MIB):
        block_bytes, vmem_limit = 10 * _MIB, 48 * _MIB      # v7x: 64 MiB VMEM/TC
    elif "v6" in kind:
        block_bytes, vmem_limit = 12 * _MIB, 64 * _MIB      # v6e: 128 MiB VMEM
    else:
        block_bytes, vmem_limit = 8 * _MIB, 48 * _MIB       # conservative default

    if vmem_cap:
        vmem_limit = min(vmem_limit, int(vmem_cap) * 3 // 4)
        # quant pass live set ~= 4 * block (in+out, double buffered) -> keep margin
        block_bytes = min(block_bytes, max(_MIB, vmem_limit // 5))
    return block_bytes, vmem_limit


# ----------------------------- layout helpers ------------------------------ #
def _slab(x):
    """Flatten x to a lane-dense 2D slab (rows, W), W a multiple of 128."""
    n = x.size
    best = 0
    w = 128
    while w <= _MAX_SLAB_WIDTH:
        if n % w == 0:
            best = w
        w += 128
    if best:
        return x.reshape(n // best, best)
    # TODO(synk): element counts with no multiple-of-128 factor fall back to the
    # native trailing dim (possibly lane-sparse); pad-and-slice path not implemented.
    return x.reshape(-1, x.shape[-1])


def _row_block(rows, width, itemsize, block_bytes):
    """Row block (multiple of 8) under the byte budget; >=2 blocks when possible."""
    bytes_per_row = max(width * itemsize, 1)
    max_rows = max(8, (block_bytes // bytes_per_row) // 8 * 8)
    if rows > max_rows:
        return max_rows, -(-rows // max_rows)
    if rows >= 16:
        # Split a single-block grid in two so v7x's second TensorCore gets work.
        half = ((rows + 1) // 2 + 7) // 8 * 8
        if half < rows:
            return half, -(-rows // half)
    return rows, 1          # single block; full dims are always a legal block


# ----------------------------- kernels ------------------------------------- #
def _write_partials(min_ref, max_ref, mn, mx):
    # Full (8,128) broadcast tiles -> unmasked vector stores, legal layout.
    min_ref[...] = jnp.full(min_ref.shape, mn, jnp.float32)
    max_ref[...] = jnp.full(max_ref.shape, mx, jnp.float32)


def _minmax_kernel(x_ref, *rest, total_rows, has_identity):
    """Per-block partial min / max (optionally fused identity + x)."""
    if has_identity:
        id_ref, min_ref, max_ref = rest
    else:
        min_ref, max_ref = rest

    xv = x_ref[...].astype(jnp.float32)          # cast on the VPU, not in HBM
    if has_identity:
        xv = xv + id_ref[...].astype(jnp.float32)

    rows, cols = xv.shape
    if total_rows % rows != 0:
        # A partial tail block exists: only the *last* block pays the mask cost.
        i = pl.program_id(0)
        last = pl.num_programs(0) - 1

        @pl.when(i != last)
        def _():
            _write_partials(min_ref, max_ref, jnp.min(xv), jnp.max(xv))

        @pl.when(i == last)
        def _():
            rid = i * rows + lax.broadcasted_iota(jnp.int32, (rows, cols), 0)
            valid = rid < total_rows
            _write_partials(min_ref, max_ref,
                            jnp.min(jnp.where(valid, xv, jnp.inf)),
                            jnp.max(jnp.where(valid, xv, -jnp.inf)))
    else:
        _write_partials(min_ref, max_ref, jnp.min(xv), jnp.max(xv))


def _quant_dequant_kernel(s_ref, x_ref, o_ref, *, n):
    """SymmetricQuantFunction + rescale:
       out = clamp(round(x * (1/scale)), -n, n-1) * scale, in x's dtype."""
    scale = s_ref[0]        # SMEM scalar
    inv_scale = s_ref[1]    # reciprocal hoisted out of the elementwise hot loop
    xv = x_ref[...].astype(jnp.float32)
    q = jnp.clip(jnp.round(xv * inv_scale), -n, n - 1.0)
    o_ref[...] = (q * scale).astype(o_ref.dtype)


# ----------------------------- pallas wrappers ----------------------------- #
def pallas_minmax(x2d, identity2d=None):
    """Global min / max of (identity + x) via independent per-block partials."""
    rows, width = x2d.shape
    block_bytes, vmem_limit = _tuning()
    block_rows, nblk = _row_block(rows, width, x2d.dtype.itemsize, block_bytes)
    kernel = functools.partial(_minmax_kernel, total_rows=rows,
                               has_identity=identity2d is not None)
    in_specs = [pl.BlockSpec((block_rows, width), lambda i: (i, 0))]
    args = [x2d]
    if identity2d is not None:
        in_specs.append(pl.BlockSpec((block_rows, width), lambda i: (i, 0)))
        args.append(identity2d)
    mins, maxs = pl.pallas_call(
        kernel,
        out_shape=(jax.ShapeDtypeStruct((nblk * 8, 128), jnp.float32),
                   jax.ShapeDtypeStruct((nblk * 8, 128), jnp.float32)),
        grid_spec=pltpu.PrefetchScalarGridSpec(
            num_scalar_prefetch=0,
            grid=(nblk,),
            in_specs=in_specs,
            out_specs=[pl.BlockSpec((8, 128), lambda i: (i, 0)),
                       pl.BlockSpec((8, 128), lambda i: (i, 0))],
        ),
        compiler_params=pltpu.CompilerParams(
            dimension_semantics=("parallel",),
            vmem_limit_bytes=vmem_limit),
    )(*args)
    # Tiny glue reduce over the per-block broadcast tiles (fused under jit).
    return jnp.min(mins), jnp.max(maxs)


def pallas_quant_dequant(x2d, scale_and_inv, n):
    """Quantize->clamp->dequantize on the lane-dense slab, native dtype I/O."""
    rows, width = x2d.shape
    block_bytes, vmem_limit = _tuning()
    block_rows, nblk = _row_block(rows, width, x2d.dtype.itemsize, block_bytes)
    kernel = functools.partial(_quant_dequant_kernel, n=float(n))
    return pl.pallas_call(
        kernel,
        out_shape=jax.ShapeDtypeStruct((rows, width), x2d.dtype),
        grid_spec=pltpu.PrefetchScalarGridSpec(
            num_scalar_prefetch=0,
            grid=(nblk,),
            in_specs=[pl.BlockSpec(memory_space=pltpu.MemorySpace.SMEM),
                      pl.BlockSpec((block_rows, width), lambda i: (i, 0))],
            out_specs=pl.BlockSpec((block_rows, width), lambda i: (i, 0)),
        ),
        compiler_params=pltpu.CompilerParams(
            dimension_semantics=("parallel",),
            vmem_limit_bytes=vmem_limit),
    )(scale_and_inv, x2d)


# ----------------------------- jitted forward ------------------------------ #
@functools.partial(
    jax.jit,
    static_argnames=("activation_bit", "act_range_momentum",
                     "running_stat", "symmetric"))
def _quant_act_forward(x, identity, x_min, x_max, specified_min, specified_max,
                       *, activation_bit, act_range_momentum, running_stat,
                       symmetric):
    """One jit for both pallas kernels and all scalar glue (single dispatch)."""
    x_slab = _slab(x)
    id_slab = _slab(identity) if identity is not None else None
    new_x_min, new_x_max = x_min, x_max

    if running_stat:
        bmin, bmax = pallas_minmax(x_slab, id_slab)   # fused identity + x
        eq = jnp.all(jnp.equal(x_min, x_max))
        if act_range_momentum == -1:
            upd_min = jnp.minimum(x_min, bmin)
            upd_max = jnp.maximum(x_max, bmax)
        else:
            m = act_range_momentum
            upd_min = x_min * m + bmin * (1.0 - m)
            upd_max = x_max * m + bmax * (1.0 - m)
        new_x_min = jnp.where(eq, x_min + bmin, upd_min)
        new_x_max = jnp.where(eq, x_max + bmax, upd_max)

    if not symmetric:
        x_act = x if identity is None else identity + x
        return x_act, None, new_x_min, new_x_max

    use_min = new_x_min if specified_min is None else specified_min
    use_max = new_x_max if specified_max is None else specified_max

    # symmetric_linear_quantization_params (per-tensor)
    n = 2 ** (activation_bit - 1) - 1
    sat = jnp.maximum(jnp.abs(use_min), jnp.abs(use_max))
    scale = (jnp.maximum(sat, 1e-8) / n).reshape(-1).astype(jnp.float32)

    # NOTE: the reference quantizes `x` (not x_act) when pre_act_scaling_factor
    # is None — reproduced exactly.
    s = scale[0]
    scale_and_inv = jnp.stack([s, 1.0 / s]).astype(jnp.float32)
    out = pallas_quant_dequant(x_slab, scale_and_inv, n).reshape(x.shape)
    return out, scale, new_x_min, new_x_max


# ----------------------------- QuantAct module ----------------------------- #
class QuantActPallas:
    """JAX/Pallas port of fairseq QuantAct (per-tensor symmetric mode)."""

    def __init__(self, activation_bit, act_range_momentum=0.95,
                 running_stat=True, per_channel=False, channel_len=None,
                 quant_mode='none'):
        if quant_mode == 'asymmetric':
            raise NotImplementedError(
                'unsupported quant mode: {}'.format(quant_mode))
        if quant_mode not in ('none', 'symmetric'):
            raise ValueError('unknown quant mode: {}'.format(quant_mode))
        # TODO(synk): per_channel=True path (channel-wise min/max over the first
        # two axes + per-channel scale broadcast) not implemented.
        assert not per_channel, "per_channel mode not implemented"
        self.activation_bit = activation_bit
        self.act_range_momentum = act_range_momentum
        self.running_stat = running_stat
        self.quant_mode = quant_mode
        self.percentile = False
        self.per_channel = per_channel
        # buffers (deterministic init, matches torch.zeros(1))
        self.x_min = jnp.zeros((1,), jnp.float32)
        self.x_max = jnp.zeros((1,), jnp.float32)
        self.act_scaling_factor = jnp.zeros((1,), jnp.float32)

    def fix(self):
        self.running_stat = False

    def unfix(self):
        self.running_stat = True

    def __call__(self, x, pre_act_scaling_factor=None, identity=None,
                 identity_scaling_factor=None, specified_min=None,
                 specified_max=None):
        # TODO(synk): fixedpoint_mul path (pre_act_scaling_factor is not None)
        # not implemented; only the SymmetricQuantFunction path is covered.
        assert pre_act_scaling_factor is None
        out, scale, new_min, new_max = _quant_act_forward(
            x, identity, self.x_min, self.x_max, specified_min, specified_max,
            activation_bit=self.activation_bit,
            act_range_momentum=self.act_range_momentum,
            running_stat=self.running_stat,
            symmetric=(self.quant_mode == 'symmetric'))
        # TODO(synk): buffer updates are Python side effects (eager torch-buffer
        # semantics); thread x_min/x_max/act_scaling_factor explicitly if this
        # module is itself called under an outer jax.jit.
        self.x_min = new_min
        self.x_max = new_max
        if scale is None:
            return out, None
        self.act_scaling_factor = scale
        return out, self.act_scaling_factor


# ----------------------------- demo / check -------------------------------- #
def _reference(x, activation_bit, identity=None):
    """Pure-JAX reference of the same forward (fresh zero buffers)."""
    n = 2 ** (activation_bit - 1) - 1
    x_act = x if identity is None else identity + x
    xf = x_act.astype(jnp.float32)
    bmin, bmax = jnp.min(xf), jnp.max(xf)
    # buffers start equal (zeros) -> x_min = 0 + bmin, x_max = 0 + bmax
    scale = jnp.maximum(jnp.maximum(jnp.abs(bmin), jnp.abs(bmax)), 1e-8) / n
    inv = 1.0 / scale
    q = jnp.clip(jnp.round(x.astype(jnp.float32) * inv), -n, n - 1.0)
    return (q * scale).astype(x.dtype), scale


if __name__ == "__main__":
    key = jax.random.PRNGKey(0)
    k1, k2, k3 = jax.random.split(key, 3)

    # small shape implied by the module: (batch=2, seq=8, hidden=32)
    x = jax.random.normal(k1, (2, 8, 32), dtype=jnp.float32)

    # plain path
    qa = QuantActPallas(activation_bit=8, quant_mode='symmetric')
    out, scale = qa(x)
    out = jax.block_until_ready(out)
    scale = jax.block_until_ready(scale)
    ref_out, ref_scale = _reference(x, 8)
    assert out.shape == x.shape and out.dtype == x.dtype
    assert jnp.allclose(scale[0], ref_scale, rtol=1e-6, atol=1e-8)
    assert jnp.allclose(out, ref_out, rtol=1e-5, atol=1e-6)

    # identity-fused path (fresh module so buffers start at zero)
    res = jax.random.normal(k2, (2, 8, 32), dtype=jnp.float32)
    qa2 = QuantActPallas(activation_bit=8, quant_mode='symmetric')
    out2, scale2 = qa2(x, identity=res)
    out2 = jax.block_until_ready(out2)
    ref_out2, ref_scale2 = _reference(x, 8, identity=res)
    assert out2.shape == x.shape and out2.dtype == x.dtype
    assert jnp.allclose(scale2[0], ref_scale2, rtol=1e-6, atol=1e-8)
    assert jnp.allclose(out2, ref_out2, rtol=1e-5, atol=1e-6)

    # multi-block grid with a partial tail block (exercises nblk > 1 + masking)
    x3 = jax.random.normal(k3, (20, 64, 128), dtype=jnp.float32)
    qa3 = QuantActPallas(activation_bit=8, quant_mode='symmetric')
    out3, scale3 = qa3(x3)
    out3 = jax.block_until_ready(out3)
    ref_out3, ref_scale3 = _reference(x3, 8)
    assert out3.shape == x3.shape and out3.dtype == x3.dtype
    assert jnp.allclose(scale3[0], ref_scale3, rtol=1e-6, atol=1e-8)
    assert jnp.allclose(out3, ref_out3, rtol=1e-5, atol=1e-6)

    # bf16 activations stay bf16 on the wire (byte-based block budget path)
    xb = x.astype(jnp.bfloat16)
    qa4 = QuantActPallas(activation_bit=8, quant_mode='symmetric')
    out4, scale4 = qa4(xb)
    out4 = jax.block_until_ready(out4)
    ref_out4, ref_scale4 = _reference(xb, 8)
    assert out4.shape == xb.shape and out4.dtype == jnp.bfloat16
    assert jnp.allclose(scale4[0], ref_scale4, rtol=1e-5, atol=1e-7)
    assert jnp.allclose(out4.astype(jnp.float32), ref_out4.astype(jnp.float32),
                        rtol=1e-2, atol=1e-2)

    print("KERNEL_OK")
</pallas_src>

<mosaic_0001>
module attributes {stable_mosaic.version = 11 : i64} {
  func.func @_minmax_kernel(%arg0: i32, %arg1: memref<1x512xf32, #tpu.memory_space<vmem>>, %arg2: memref<8x128xf32, #tpu.memory_space<vmem>>, %arg3: memref<8x128xf32, #tpu.memory_space<vmem>>) attributes {dimension_semantics = [#tpu.dimension_semantics<parallel>], iteration_bounds = array<i64: 1>, scalar_prefetch = 0 : i64, scratch_operands = 0 : i64, tpu.core_type = #tpu.core_type<tc>, window_params = [{transform_indices = @transform_0, window_bounds = array<i64: 1, 512>}, {transform_indices = @transform_1, window_bounds = array<i64: 8, 128>}, {transform_indices = @transform_2, window_bounds = array<i64: 8, 128>}]} {
    %c0 = arith.constant 0 : index
    %c0_0 = arith.constant 0 : index
    %0 = vector.load %arg1[%c0, %c0_0] : memref<1x512xf32, #tpu.memory_space<vmem>>, vector<1x512xf32>
    %1 = vector.shape_cast %0 : vector<1x512xf32> to vector<1x1x512xf32>
    %cst = arith.constant dense<0x7F800000> : vector<1xf32>
    %2 = vector.multi_reduction <minimumf>, %1, %cst [1, 2] : vector<1x1x512xf32> to vector<1xf32>
    %3 = vector.shape_cast %2 : vector<1xf32> to vector<1x1x1xf32>
    %4 = vector.extract %3[0, 0, 0] : f32 from vector<1x1x1xf32>
    %5 = vector.shape_cast %0 : vector<1x512xf32> to vector<1x1x512xf32>
    %cst_1 = arith.constant dense<0xFF800000> : vector<1xf32>
    %6 = vector.multi_reduction <maximumf>, %5, %cst_1 [1, 2] : vector<1x1x512xf32> to vector<1xf32>
    %7 = vector.shape_cast %6 : vector<1xf32> to vector<1x1x1xf32>
    %8 = vector.extract %7[0, 0, 0] : f32 from vector<1x1x1xf32>
    %9 = vector.broadcast %4 : f32 to vector<8x128xf32>
    %c0_2 = arith.constant 0 : index
    %c0_3 = arith.constant 0 : index
    %10 = vector.load %arg2[%c0_2, %c0_3] : memref<8x128xf32, #tpu.memory_space<vmem>>, vector<8x128xf32>
    tpu.vector_store %arg2[%c0_2, %c0_3], %9 {strides = array<i32>} : memref<8x128xf32, #tpu.memory_space<vmem>>, vector<8x128xf32>,
    %11 = vector.broadcast %8 : f32 to vector<8x128xf32>
    %c0_4 = arith.constant 0 : index
    %c0_5 = arith.constant 0 : index
    %12 = vector.load %arg3[%c0_4, %c0_5] : memref<8x128xf32, #tpu.memory_space<vmem>>, vector<8x128xf32>
    tpu.vector_store %arg3[%c0_4, %c0_5], %11 {strides = array<i32>} : memref<8x128xf32, #tpu.memory_space<vmem>>, vector<8x128xf32>,
    return
  }
  func.func @transform_0(%arg0: i32) -> (i32, i32) {
    %c0_i32 = arith.constant 0 : i32
    %c0_i32_0 = arith.constant 0 : i32
    return %arg0, %c0_i32 : i32, i32
  }
  func.func @transform_1(%arg0: i32) -> (i32, i32) {
    %c0_i32 = arith.constant 0 : i32
    %c0_i32_0 = arith.constant 0 : i32
    return %arg0, %c0_i32 : i32, i32
  }
  func.func @transform_2(%arg0: i32) -> (i32, i32) {
    %c0_i32 = arith.constant 0 : i32
    %c0_i32_0 = arith.constant 0 : i32
    return %arg0, %c0_i32 : i32, i32
  }
}

module attributes {stable_mosaic.version = 11 : i64} {
  func.func @_quant_dequant_kernel(%arg0: i32, %arg1: memref<2xf32, #tpu.memory_space<smem>>, %arg2: memref<1x512xf32, #tpu.memory_space<vmem>>, %arg3: memref<1x512xf32, #tpu.memory_space<vmem>>) attributes {dimension_semantics = [#tpu.dimension_semantics<parallel>], iteration_bounds = array<i64: 1>, scalar_prefetch = 0 : i64, scratch_operands = 0 : i64, tpu.core_type = #tpu.core_type<tc>, window_params = [{transform_indices = @transform_0, window_bounds = array<i64: 2>}, {transform_indices = @transform_1, window_bounds = array<i64: 1, 512>}, {transform_indices = @transform_2, window_bounds = array<i64: 1, 512>}]} {
    %c0 = arith.constant 0 : index
    %0 = memref.load %arg1[%c0] : memref<2xf32, #tpu.memory_space<smem>>
    %c1 = arith.constant 1 : index
    %1 = memref.load %arg1[%c1] : memref<2xf32, #tpu.memory_space<smem>>
    %c0_0 = arith.constant 0 : index
    %c0_1 = arith.constant 0 : index
    %2 = vector.load %arg2[%c0_0, %c0_1] : memref<1x512xf32, #tpu.memory_space<vmem>>, vector<1x512xf32>
    %3 = vector.broadcast %1 : f32 to vector<1x512xf32>
    %4 = arith.mulf %2, %3 : vector<1x512xf32>
    %5 = math.roundeven %4 : vector<1x512xf32>
    %cst = arith.constant -1.270000e+02 : f32
    %cst_2 = arith.constant 1.260000e+02 : f32
    %6 = vector.broadcast %cst : f32 to vector<1x512xf32>
    %7 = arith.maximumf %6, %5 : vector<1x512xf32>
    %8 = vector.broadcast %cst_2 : f32 to vector<1x512xf32>
    %9 = arith.minimumf %8, %7 : vector<1x512xf32>
    %10 = vector.broadcast %0 : f32 to vector<1x512xf32>
    %11 = arith.mulf %9, %10 : vector<1x512xf32>
    %c0_3 = arith.constant 0 : index
    %c0_4 = arith.constant 0 : index
    %12 = vector.load %arg3[%c0_3, %c0_4] : memref<1x512xf32, #tpu.memory_space<vmem>>, vector<1x512xf32>
    tpu.vector_store %arg3[%c0_3, %c0_4], %11 {strides = array<i32>} : memref<1x512xf32, #tpu.memory_space<vmem>>, vector<1x512xf32>,
    return
  }
  func.func @transform_0(%arg0: i32) -> i32 {
    %c0_i32 = arith.constant 0 : i32
    %c0_i32_0 = arith.constant 0 : i32
    return %c0_i32 : i32
  }
  func.func @transform_1(%arg0: i32) -> (i32, i32) {
    %c0_i32 = arith.constant 0 : i32
    %c0_i32_0 = arith.constant 0 : i32
    return %arg0, %c0_i32 : i32, i32
  }
  func.func @transform_2(%arg0: i32) -> (i32, i32) {
    %c0_i32 = arith.constant 0 : i32
    %c0_i32_0 = arith.constant 0 : i32
    return %arg0, %c0_i32 : i32, i32
  }
}

</mosaic_0001>

<llo_original>
// kernel: _quant_act_forward.2
$region0: #{_quant_act_forward.2}
  #allocation0 [shape = 'u32[]', space=smem, size = 0x4, offset = 0x4, fixed_abs, tag = 'smem constant byte address 0x4 - core index']
  #allocation1 [shape = 'u32[144,128]{1,0:T(1,128)}', space=vmem, size = 0x12000, scoped, tag = 'internal scratch']
  %s0 = inlined_call_operand.vmem [shape: f32[1,512], index: 0, kind: input, shape index: {}]
  %s1 = inlined_call_operand.vmem [shape: f32[8,128], index: 1, kind: output, shape index: {0}]
  %s2 = inlined_call_operand.vmem [shape: f32[8,128], index: 2, kind: output, shape index: {1}]
  %3 = xla_tuple %s1, %s2
  %s4 = sld [smem:[#allocation0]]
  $region22: #{_quant_act_forward.2} parent=0
    _
  %s6 = ssub.s32 1, %s4
  %s7 = scalar_select 0, %s6, %s4
  // Predicated region
  $region2: #{_quant_act_forward.2} parent=0 // pred_check
    _
  $region3: #{_quant_act_forward.2} parent=0 // pred_check_branch
    %9 = sbr.rel (0) target = $region5
  $region4: #{_quant_act_forward.2} parent=0 // pred_region
    _
  $region5: #{_quant_act_forward.2} parent=0 // pred_fallthru
    _
  %v10 = vld [vmem:[%s0] sm:$0xf]
  %v12 = vlaneseq
  %v13 = vshrl.u32 %v12, 7
  %v14 = vsub.s32 0, %v13
  %v15 = vrot.slane %v10, %v14
  %v16 = vlaneseq
  %v17 = vshrl.u32 %v16, 7
  %v18 = vsub.s32 1, %v17
  %v19 = vrot.slane %v10, %v18
  %v20 = vlaneseq
  %v21 = vshrl.u32 %v20, 7
  %v22 = vsub.s32 2, %v21
  %v23 = vrot.slane %v10, %v22
  %v24 = vlaneseq
  %v25 = vshrl.u32 %v24, 7
  %v26 = vsub.s32 3, %v25
  %v27 = vrot.slane %v10, %v26
  %vm32 = vcmask 1040384
  %v33 = vsel %vm32, %v15, inf
  %v34 = vsel %vm32, %v19, inf
  %v35 = vsel %vm32, %v23, inf
  %v36 = vsel %vm32, %v27, inf
  %v37 = vmin.f32 %v33, %v34
  %v38 = vmin.f32 %v35, %v36
  %v39 = vmin.f32 %v37, %v38
  %40 = vmin.xlane.f32.xlu0 %v39
  %v41 = vpop.xlane.xlu0 %40
  %v42 = vrot.slane %v41, 4
  %v43 = vmin.f32 %v41, %v42
  %v44 = vrot.slane %v43, 2
  %v45 = vmin.f32 %v43, %v44
  %v46 = vrot.slane %v45, 1
  %v47 = vmin.f32 %v45, %v46
  %s48 = vtos %v47
  %v49 = vsel %vm32, %v15, -inf
  %v50 = vsel %vm32, %v19, -inf
  %v51 = vsel %vm32, %v23, -inf
  %v52 = vsel %vm32, %v27, -inf
  %v53 = vmax.f32 %v49, %v50
  %v54 = vmax.f32 %v51, %v52
  %v55 = vmax.f32 %v53, %v54
  %56 = vmax.xlane.f32.xlu0 %v55
  %v57 = vpop.xlane.xlu0 %56
  %v58 = vrot.slane %v57, 4
  %v59 = vmax.f32 %v57, %v58
  %v60 = vrot.slane %v59, 2
  %v61 = vmax.f32 %v59, %v60
  %v62 = vrot.slane %v61, 1
  %v63 = vmax.f32 %v61, %v62
  %s64 = vtos %v63
  %v65 = vstv %s48
  %66 = vst [vmem:[%s1] sm:$0xff] %v65
  %v67 = vstv %s64
  %68 = vst [vmem:[%s2] sm:$0xff] %v67
  // Predicated region
  $region6: #{_quant_act_forward.2} parent=0 // pred_check
    _
  $region7: #{_quant_act_forward.2} parent=0 // pred_check_branch
    %70 = sbr.rel (0) target = $region9
  $region8: #{_quant_act_forward.2} parent=0 // pred_region
    _
  $region9: #{_quant_act_forward.2} parent=0 // pred_fallthru
    _
  // Predicated region
  $region10: #{_quant_act_forward.2} parent=0 // pred_check
    _
  $region11: #{_quant_act_forward.2} parent=0 // pred_check_branch
    %72 = sbr.rel (0) target = $region13
  $region12: #{_quant_act_forward.2} parent=0 // pred_region
    _
  $region13: #{_quant_act_forward.2} parent=0 // pred_fallthru
    _
  // Predicated region
  $region14: #{_quant_act_forward.2} parent=0 // pred_check
    _
  $region15: #{_quant_act_forward.2} parent=0 // pred_check_branch
    %74 = sbr.rel (0) target = $region17
  $region16: #{_quant_act_forward.2} parent=0 // pred_region
    _
  $region17: #{_quant_act_forward.2} parent=0 // pred_fallthru
    _
  // Predicated region
  $region18: #{_quant_act_forward.2} parent=0 // pred_check
    _
  $region19: #{_quant_act_forward.2} parent=0 // pred_check_branch
    %76 = sbr.rel (0) target = $region21
  $region20: #{_quant_act_forward.2} parent=0 // pred_region
    _
  $region21: #{_quant_act_forward.2} parent=0 // pred_fallthru
    _

// kernel: _quant_act_forward.3
$region0: #{_quant_act_forward.3}
  #allocation0 [shape = 'u32[]', space=smem, size = 0x4, offset = 0x4, fixed_abs, tag = 'smem constant byte address 0x4 - core index']
  #allocation1 [shape = 'u32[144,128]{1,0:T(1,128)}', space=vmem, size = 0x12000, scoped, tag = 'internal scratch']
  %s0 = inlined_call_operand.vmem [shape: f32[2], index: 0, kind: input, shape index: {}]
  %s1 = inlined_call_operand.vmem [shape: f32[1,512], index: 1, kind: input, shape index: {}]
  %s2 = inlined_call_operand.vmem [shape: f32[1,512], index: 2, kind: output, shape index: {}]
  %s3 = sld [smem:[#allocation0]]
  $region22: #{_quant_act_forward.3} parent=0
    _
  %s5 = ssub.s32 1, %s3
  %s6 = scalar_select 0, %s5, %s3
  $region1: #{_quant_act_forward.3} parent=0
    #allocation2 [shape = 'u8[512]{0}', space=smem, size = 0x200, scoped, tag = 'input window, operand 0, single buffered']
    #allocation3 [shape = 's32[1]{0}', space=sflag, size = 0x4, scoped, tag = 'scoped memory for _quant_act_forward.3']
    %7 = vsyncpa [#allocation3], 0
    // Predicated region
    $region2: #{_quant_act_forward.3} parent=1 // pred_check
      _
    $region3: #{_quant_act_forward.3} parent=1 // pred_check_branch
      %9 = sbr.rel (0) target = $region5
    $region4: #{_quant_act_forward.3} parent=1 // pred_region
      %s11 = ssub.s32 16, 16
      %12 = vsyncadd [#allocation3], %s11
      %s14 = sshll.u32 %s0, 4
      %s15 = int_to_ptr.vmem [resolvable:$true] %s14
      %17 = dma.vmem_to_smem %s15, 16, [#allocation2], [#allocation3]
    $region5: #{_quant_act_forward.3} parent=1 // pred_fallthru
      _
    // Predicated region
    $region6: #{_quant_act_forward.3} parent=1 // pred_check
      _
    $region7: #{_quant_act_forward.3} parent=1 // pred_check_branch
      %19 = sbr.rel (0) target = $region9
    $region8: #{_quant_act_forward.3} parent=1 // pred_region
      _
    $region9: #{_quant_act_forward.3} parent=1 // pred_fallthru
      _
    // Predicated region
    $region10: #{_quant_act_forward.3} parent=1 // pred_check
      _
    $region11: #{_quant_act_forward.3} parent=1 // pred_check_branch
      %21 = sbr.rel (0) target = $region13
    $region12: #{_quant_act_forward.3} parent=1 // pred_region
      %22 = dma.done [#allocation3], 16
    $region13: #{_quant_act_forward.3} parent=1 // pred_fallthru
      _
    %23 = sfence
    %s24 = sld [smem:[#allocation2]]
    %s25 = sld [smem:[#allocation2 + $0x1]]
    %v26 = vld [vmem:[%s1] sm:$0xf]
    %v27 = vstv %s25
    %v28 = vmul.f32 %v26, %v27
    %v29 = vround.ne.pseudo %v28
    %v30 = vmax.f32 %v29, -127.0
    %v31 = vmin.f32 %v30, 126.0
    %v32 = vstv %s24
    %v33 = vmul.f32 %v31, %v32
    %v34 = vlaneseq
    %vm35 = vcmp.ge.s32.totalorder %v34, 0
    %vm36 = vcmp.lt.s32.totalorder %v34, 512
    %vm37 = vmand %vm35, %vm36
    %38 = vst.msk [vmem:[%s2] sm:$0xf] %vm37, %v33
    // Predicated region
    $region14: #{_quant_act_forward.3} parent=1 // pred_check
      _
    $region15: #{_quant_act_forward.3} parent=1 // pred_check_branch
      %40 = sbr.rel (0) target = $region17
    $region16: #{_quant_act_forward.3} parent=1 // pred_region
      _
    $region17: #{_quant_act_forward.3} parent=1 // pred_fallthru
      _
    // Predicated region
    $region18: #{_quant_act_forward.3} parent=1 // pred_check
      _
    $region19: #{_quant_act_forward.3} parent=1 // pred_check_branch
      %42 = sbr.rel (0) target = $region21
    $region20: #{_quant_act_forward.3} parent=1 // pred_region
      _
    $region21: #{_quant_act_forward.3} parent=1 // pred_fallthru
      _
    %43 = vsyncpa [#allocation3], 1

</llo_original>
